<compile_context>
chip_gen: v7x
topology: tpu7x:2x2x1
jax: 0.10.0
libtpu: 0.0.40
codegen_flags: <defaults>
</compile_context>

<pallas_src>
import functools

import jax
import jax.numpy as jnp
from jax.experimental import pallas as pl
from jax.experimental.pallas import tpu as pltpu


def _round_up(n, m):
    return ((n + m - 1) // m) * m


def _actor_critic_kernel(x_ref, w1_ref, b1_ref, w2_ref, b2_ref,
                         wh_ref, bh_ref, actor_ref, critic_ref, *, action_dim):
    # In-kernel operand cast: f32 x -> compute dtype (no-op on the f32 path).
    x = x_ref[...].astype(w1_ref.dtype)

    # fc1 + ReLU (MXU in operand dtype, f32 accumulate; elementwise in f32).
    h1 = jnp.dot(x, w1_ref[...], preferred_element_type=jnp.float32) + b1_ref[...]
    h1 = jnp.maximum(h1, 0.0).astype(w2_ref.dtype)

    # fc2 + ReLU.
    h2 = jnp.dot(h1, w2_ref[...], preferred_element_type=jnp.float32) + b2_ref[...]
    h2 = jnp.maximum(h2, 0.0).astype(wh_ref.dtype)

    # Fused actor+critic head: a single lane-dense (hidden, 128) MXU pass.
    # Only the useful columns are stored (masked stores, tiny HBM writeback):
    # cols [0:action_dim] -> actor, col [action_dim] -> critic.
    head = jnp.dot(h2, wh_ref[...], preferred_element_type=jnp.float32) + bh_ref[...]
    actor_ref[...] = head[:, :action_dim].astype(actor_ref.dtype)
    critic_ref[...] = head[:, action_dim:action_dim + 1].astype(critic_ref.dtype)


def prepare_params(params, compute_dtype=jnp.bfloat16):
    """One-time parameter prep (do NOT call per step):
       - fuse actor+critic into one lane-dense (hidden, 128) head weight/bias
       - cast matmul weights to the MXU compute dtype
       Biases stay f32 (bias-add / ReLU run in f32 on the VPU)."""
    hidden = params["w1"].shape[1]
    action_dim = params["wa"].shape[1]
    head_dim = action_dim + 1
    head_pad = _round_up(max(head_dim, 128), 128)

    wh = jnp.zeros((hidden, head_pad), jnp.float32)
    wh = wh.at[:, :action_dim].set(params["wa"])
    wh = wh.at[:, action_dim:head_dim].set(params["wc"])
    bh = jnp.zeros((1, head_pad), jnp.float32)
    bh = bh.at[:, :action_dim].set(params["ba"])
    bh = bh.at[:, action_dim:head_dim].set(params["bc"])

    return {
        "w1": params["w1"].astype(compute_dtype),
        "b1": params["b1"].astype(jnp.float32),
        "w2": params["w2"].astype(compute_dtype),
        "b2": params["b2"].astype(jnp.float32),
        "wh": wh.astype(compute_dtype),
        "bh": bh,  # f32
    }


@functools.partial(jax.jit, static_argnames=("action_dim", "block_b"))
def actor_critic_forward(x, prepared, action_dim, *, block_b=1024):
    """x: (B, input_dim) float32.  prepared: output of prepare_params().

    Returns (action_means (B, action_dim), state_value (B, 1)), float32."""
    B, input_dim = x.shape
    hidden = prepared["w1"].shape[1]
    head_pad = prepared["wh"].shape[1]

    # Pad batch only to a multiple of 8 (sublane); ragged last tile is handled
    # by the cdiv grid below.  Padded/edge rows are row-independent garbage
    # that is dropped by the final [:B] slice -- do NOT reduce over the batch
    # inside the kernel without masking them.
    B_pad = _round_up(B, 8)
    if B_pad != B:
        x = jnp.pad(x, ((0, B_pad - B), (0, 0)))

    # Large batch tile (the kernel is per-grid-step-overhead / DMA bound, not
    # MXU bound), but keep >= 2 tiles whenever the batch allows so the
    # "parallel" axis can shard across both v7x TensorCores.
    bb = min(block_b, max(_round_up(pl.cdiv(B_pad, 2), 8), 8))
    grid = (pl.cdiv(B_pad, bb),)

    def batch_map(i):
        return (i, 0)

    def replicated_map(i):
        return (0, 0)

    in_specs = [
        pl.BlockSpec((bb, input_dim), batch_map),              # x tile (f32)
        pl.BlockSpec((input_dim, hidden), replicated_map),     # w1
        pl.BlockSpec((1, hidden), replicated_map),             # b1 (f32)
        pl.BlockSpec((hidden, hidden), replicated_map),        # w2
        pl.BlockSpec((1, hidden), replicated_map),             # b2 (f32)
        pl.BlockSpec((hidden, head_pad), replicated_map),      # fused head W
        pl.BlockSpec((1, head_pad), replicated_map),           # fused head b
    ]
    out_specs = [
        pl.BlockSpec((bb, action_dim), batch_map),             # actor means
        pl.BlockSpec((bb, 1), batch_map),                      # state value
    ]
    out_shape = (
        jax.ShapeDtypeStruct((B_pad, action_dim), jnp.float32),
        jax.ShapeDtypeStruct((B_pad, 1), jnp.float32),
    )

    kernel = functools.partial(_actor_critic_kernel, action_dim=action_dim)

    actor, critic = pl.pallas_call(
        kernel,
        grid_spec=pltpu.PrefetchScalarGridSpec(
            num_scalar_prefetch=0,
            grid=grid,
            in_specs=in_specs,
            out_specs=out_specs,
        ),
        out_shape=out_shape,
        compiler_params=pltpu.CompilerParams(
            dimension_semantics=("parallel",),
        ),
    )(x, prepared["w1"], prepared["b1"], prepared["w2"], prepared["b2"],
      prepared["wh"], prepared["bh"])

    if B_pad != B:
        actor = actor[:B]
        critic = critic[:B]
    return actor, critic


def init_params(key, input_dim, hidden, action_dim):
    """Deterministic synthetic init (PyTorch-Linear-like uniform ranges).

    Weights are stored transposed as (in, out); biases as (1, out)."""
    ks = jax.random.split(key, 8)

    def u(k, shape, fan_in):
        bound = 1.0 / jnp.sqrt(fan_in)
        return jax.random.uniform(k, shape, jnp.float32, -bound, bound)

    return {
        "w1": u(ks[0], (input_dim, hidden), input_dim),
        "b1": u(ks[1], (1, hidden), input_dim),
        "w2": u(ks[2], (hidden, hidden), hidden),
        "b2": u(ks[3], (1, hidden), hidden),
        "wa": u(ks[4], (hidden, action_dim), hidden),
        "ba": u(ks[5], (1, action_dim), hidden),
        "wc": u(ks[6], (hidden, 1), hidden),
        "bc": u(ks[7], (1, 1), hidden),
    }


def reference_forward(x, p):
    h1 = jnp.maximum(x @ p["w1"] + p["b1"], 0.0)
    h2 = jnp.maximum(h1 @ p["w2"] + p["b2"], 0.0)
    return h2 @ p["wa"] + p["ba"], h2 @ p["wc"] + p["bc"]


if __name__ == "__main__":
    key = jax.random.PRNGKey(0)
    k_x, k_x2, k_p = jax.random.split(key, 3)

    input_dim = 16  # state features
    hidden = 128    # fixed by the module
    action_dim = 4  # number of actions

    params = init_params(k_p, input_dim, hidden, action_dim)
    prepared_f32 = prepare_params(params, jnp.float32)
    prepared_bf16 = prepare_params(params, jnp.bfloat16)

    # ---- Small ragged batch (exercises sublane padding). ----
    B = 6  # deliberately not a multiple of 8
    x = jax.random.normal(k_x, (B, input_dim), jnp.float32)
    ref_a, ref_v = reference_forward(x, params)

    # f32 compute path: should match the reference to float tolerance.
    a_f32, v_f32 = actor_critic_forward(x, prepared_f32, action_dim)
    a_f32 = jax.block_until_ready(a_f32)
    v_f32 = jax.block_until_ready(v_f32)
    assert a_f32.shape == (B, action_dim)
    assert v_f32.shape == (B, 1)
    assert jnp.allclose(a_f32, ref_a, atol=1e-5, rtol=1e-5)
    assert jnp.allclose(v_f32, ref_v, atol=1e-5, rtol=1e-5)

    # bf16 MXU-operand path (fast production path): loose tolerance.
    # (Keep the f32 path if critic value precision matters for your RL setup.)
    a_bf, v_bf = actor_critic_forward(x, prepared_bf16, action_dim)
    a_bf = jax.block_until_ready(a_bf)
    v_bf = jax.block_until_ready(v_bf)
    assert a_bf.shape == (B, action_dim)
    assert v_bf.shape == (B, 1)
    assert jnp.allclose(a_bf, ref_a, atol=5e-2, rtol=5e-2)
    assert jnp.allclose(v_bf, ref_v, atol=5e-2, rtol=5e-2)

    # ---- Larger ragged batch (exercises the >=2-tile / cdiv grid path). ----
    B2 = 300
    x2 = jax.random.normal(k_x2, (B2, input_dim), jnp.float32)
    ref_a2, ref_v2 = reference_forward(x2, params)
    a2, v2 = actor_critic_forward(x2, prepared_f32, action_dim)
    a2 = jax.block_until_ready(a2)
    v2 = jax.block_until_ready(v2)
    assert a2.shape == (B2, action_dim)
    assert v2.shape == (B2, 1)
    assert jnp.allclose(a2, ref_a2, atol=1e-5, rtol=1e-5)
    assert jnp.allclose(v2, ref_v2, atol=1e-5, rtol=1e-5)

    print("KERNEL_OK")
</pallas_src>

<mosaic_0001>
module attributes {stable_mosaic.version = 11 : i64} {
  func.func @_actor_critic_kernel(%arg0: i32, %arg1: memref<8x16xf32, #tpu.memory_space<vmem>>, %arg2: memref<16x128xf32, #tpu.memory_space<vmem>>, %arg3: memref<1x128xf32, #tpu.memory_space<vmem>>, %arg4: memref<128x128xf32, #tpu.memory_space<vmem>>, %arg5: memref<1x128xf32, #tpu.memory_space<vmem>>, %arg6: memref<128x128xf32, #tpu.memory_space<vmem>>, %arg7: memref<1x128xf32, #tpu.memory_space<vmem>>, %arg8: memref<8x4xf32, #tpu.memory_space<vmem>>, %arg9: memref<8x1xf32, #tpu.memory_space<vmem>>) attributes {dimension_semantics = [#tpu.dimension_semantics<parallel>], iteration_bounds = array<i64: 1>, scalar_prefetch = 0 : i64, scratch_operands = 0 : i64, tpu.core_type = #tpu.core_type<tc>, window_params = [{transform_indices = @transform_0, window_bounds = array<i64: 8, 16>}, {pipeline_mode = #tpu.pipeline_mode<synchronous>, transform_indices = @transform_1, window_bounds = array<i64: 16, 128>}, {pipeline_mode = #tpu.pipeline_mode<synchronous>, transform_indices = @transform_2, window_bounds = array<i64: 1, 128>}, {pipeline_mode = #tpu.pipeline_mode<synchronous>, transform_indices = @transform_3, window_bounds = array<i64: 128, 128>}, {pipeline_mode = #tpu.pipeline_mode<synchronous>, transform_indices = @transform_4, window_bounds = array<i64: 1, 128>}, {pipeline_mode = #tpu.pipeline_mode<synchronous>, transform_indices = @transform_5, window_bounds = array<i64: 128, 128>}, {pipeline_mode = #tpu.pipeline_mode<synchronous>, transform_indices = @transform_6, window_bounds = array<i64: 1, 128>}, {transform_indices = @transform_7, window_bounds = array<i64: 8, 4>}, {transform_indices = @transform_8, window_bounds = array<i64: 8, 1>}]} {
    %c0 = arith.constant 0 : index
    %c0_0 = arith.constant 0 : index
    %0 = vector.load %arg1[%c0, %c0_0] : memref<8x16xf32, #tpu.memory_space<vmem>>, vector<8x16xf32>
    %c0_1 = arith.constant 0 : index
    %c0_2 = arith.constant 0 : index
    %1 = vector.load %arg2[%c0_1, %c0_2] : memref<16x128xf32, #tpu.memory_space<vmem>>, vector<16x128xf32>
    %cst = arith.constant dense<0.000000e+00> : vector<8x128xf32>
    %2 = tpu.matmul %0, %1, %cst {dimension_numbers = #tpu.dot_dimension_numbers<[1], [0], [0], [1], [0, 0, 1, 1], [], []>} : vector<8x16xf32>, vector<16x128xf32>, vector<8x128xf32> -> vector<8x128xf32>
    %c0_3 = arith.constant 0 : index
    %c0_4 = arith.constant 0 : index
    %3 = vector.load %arg3[%c0_3, %c0_4] : memref<1x128xf32, #tpu.memory_space<vmem>>, vector<1x128xf32>
    %4 = vector.broadcast %3 : vector<1x128xf32> to vector<8x128xf32>
    %5 = arith.addf %2, %4 : vector<8x128xf32>
    %cst_5 = arith.constant 0.000000e+00 : f32
    %6 = vector.broadcast %cst_5 : f32 to vector<8x128xf32>
    %7 = arith.maximumf %5, %6 : vector<8x128xf32>
    %c0_6 = arith.constant 0 : index
    %c0_7 = arith.constant 0 : index
    %8 = vector.load %arg4[%c0_6, %c0_7] : memref<128x128xf32, #tpu.memory_space<vmem>>, vector<128x128xf32>
    %cst_8 = arith.constant dense<0.000000e+00> : vector<8x128xf32>
    %9 = tpu.matmul %7, %8, %cst_8 {dimension_numbers = #tpu.dot_dimension_numbers<[1], [0], [0], [1], [0, 0, 1, 1], [], []>} : vector<8x128xf32>, vector<128x128xf32>, vector<8x128xf32> -> vector<8x128xf32>
    %c0_9 = arith.constant 0 : index
    %c0_10 = arith.constant 0 : index
    %10 = vector.load %arg5[%c0_9, %c0_10] : memref<1x128xf32, #tpu.memory_space<vmem>>, vector<1x128xf32>
    %11 = vector.broadcast %10 : vector<1x128xf32> to vector<8x128xf32>
    %12 = arith.addf %9, %11 : vector<8x128xf32>
    %cst_11 = arith.constant 0.000000e+00 : f32
    %13 = vector.broadcast %cst_11 : f32 to vector<8x128xf32>
    %14 = arith.maximumf %12, %13 : vector<8x128xf32>
    %c0_12 = arith.constant 0 : index
    %c0_13 = arith.constant 0 : index
    %15 = vector.load %arg6[%c0_12, %c0_13] : memref<128x128xf32, #tpu.memory_space<vmem>>, vector<128x128xf32>
    %cst_14 = arith.constant dense<0.000000e+00> : vector<8x128xf32>
    %16 = tpu.matmul %14, %15, %cst_14 {dimension_numbers = #tpu.dot_dimension_numbers<[1], [0], [0], [1], [0, 0, 1, 1], [], []>} : vector<8x128xf32>, vector<128x128xf32>, vector<8x128xf32> -> vector<8x128xf32>
    %c0_15 = arith.constant 0 : index
    %c0_16 = arith.constant 0 : index
    %17 = vector.load %arg7[%c0_15, %c0_16] : memref<1x128xf32, #tpu.memory_space<vmem>>, vector<1x128xf32>
    %18 = vector.broadcast %17 : vector<1x128xf32> to vector<8x128xf32>
    %19 = arith.addf %16, %18 : vector<8x128xf32>
    %20 = vector.extract_strided_slice %19 {offsets = [0, 0], sizes = [8, 4], strides = [1, 1]} : vector<8x128xf32> to vector<8x4xf32>
    %c0_17 = arith.constant 0 : index
    %c0_18 = arith.constant 0 : index
    %21 = vector.load %arg8[%c0_17, %c0_18] : memref<8x4xf32, #tpu.memory_space<vmem>>, vector<8x4xf32>
    tpu.vector_store %arg8[%c0_17, %c0_18], %20 {strides = array<i32>} : memref<8x4xf32, #tpu.memory_space<vmem>>, vector<8x4xf32>,
    %22 = vector.extract_strided_slice %19 {offsets = [0, 4], sizes = [8, 1], strides = [1, 1]} : vector<8x128xf32> to vector<8x1xf32>
    %c0_19 = arith.constant 0 : index
    %c0_20 = arith.constant 0 : index
    %23 = vector.load %arg9[%c0_19, %c0_20] : memref<8x1xf32, #tpu.memory_space<vmem>>, vector<8x1xf32>
    tpu.vector_store %arg9[%c0_19, %c0_20], %22 {strides = array<i32>} : memref<8x1xf32, #tpu.memory_space<vmem>>, vector<8x1xf32>,
    return
  }
  func.func @transform_0(%arg0: i32) -> (i32, i32) {
    %c0_i32 = arith.constant 0 : i32
    %c0_i32_0 = arith.constant 0 : i32
    return %arg0, %c0_i32 : i32, i32
  }
  func.func @transform_1(%arg0: i32) -> (i32, i32) {
    %c0_i32 = arith.constant 0 : i32
    %c0_i32_0 = arith.constant 0 : i32
    %c0_i32_1 = arith.constant 0 : i32
    return %c0_i32, %c0_i32_0 : i32, i32
  }
  func.func @transform_2(%arg0: i32) -> (i32, i32) {
    %c0_i32 = arith.constant 0 : i32
    %c0_i32_0 = arith.constant 0 : i32
    %c0_i32_1 = arith.constant 0 : i32
    return %c0_i32, %c0_i32_0 : i32, i32
  }
  func.func @transform_3(%arg0: i32) -> (i32, i32) {
    %c0_i32 = arith.constant 0 : i32
    %c0_i32_0 = arith.constant 0 : i32
    %c0_i32_1 = arith.constant 0 : i32
    return %c0_i32, %c0_i32_0 : i32, i32
  }
  func.func @transform_4(%arg0: i32) -> (i32, i32) {
    %c0_i32 = arith.constant 0 : i32
    %c0_i32_0 = arith.constant 0 : i32
    %c0_i32_1 = arith.constant 0 : i32
    return %c0_i32, %c0_i32_0 : i32, i32
  }
  func.func @transform_5(%arg0: i32) -> (i32, i32) {
    %c0_i32 = arith.constant 0 : i32
    %c0_i32_0 = arith.constant 0 : i32
    %c0_i32_1 = arith.constant 0 : i32
    return %c0_i32, %c0_i32_0 : i32, i32
  }
  func.func @transform_6(%arg0: i32) -> (i32, i32) {
    %c0_i32 = arith.constant 0 : i32
    %c0_i32_0 = arith.constant 0 : i32
    %c0_i32_1 = arith.constant 0 : i32
    return %c0_i32, %c0_i32_0 : i32, i32
  }
  func.func @transform_7(%arg0: i32) -> (i32, i32) {
    %c0_i32 = arith.constant 0 : i32
    %c0_i32_0 = arith.constant 0 : i32
    return %arg0, %c0_i32 : i32, i32
  }
  func.func @transform_8(%arg0: i32) -> (i32, i32) {
    %c0_i32 = arith.constant 0 : i32
    %c0_i32_0 = arith.constant 0 : i32
    return %arg0, %c0_i32 : i32, i32
  }
}

</mosaic_0001>

<llo_original>
// kernel: actor_critic_forward.1
$region0: #{actor_critic_forward.1}
  #allocation0 [shape = 'u32[]', space=smem, size = 0x4, offset = 0x4, fixed_abs, tag = 'smem constant byte address 0x4 - core index']
  #allocation1 [shape = 'u32[144,128]{1,0:T(1,128)}', space=vmem, size = 0x12000, scoped, tag = 'internal scratch']
  %s0 = inlined_call_operand.vmem [shape: f32[8,16], index: 0, kind: input, shape index: {}]
  %s1 = inlined_call_operand.vmem [shape: f32[16,128], index: 1, kind: input, shape index: {}]
  %s2 = inlined_call_operand.vmem [shape: f32[1,128], index: 2, kind: input, shape index: {}]
  %s3 = inlined_call_operand.hbm [shape: f32[128,128], index: 3, kind: input, shape index: {}]
  %s4 = inlined_call_operand.vmem [shape: f32[1,128], index: 4, kind: input, shape index: {}]
  %s5 = inlined_call_operand.hbm [shape: f32[128,128], index: 5, kind: input, shape index: {}]
  %s6 = inlined_call_operand.vmem [shape: f32[1,128], index: 6, kind: input, shape index: {}]
  %s7 = inlined_call_operand.vmem [shape: f32[8,4], index: 7, kind: output, shape index: {0}]
  %s8 = inlined_call_operand.vmem [shape: f32[8,1], index: 8, kind: output, shape index: {1}]
  %9 = xla_tuple %s7, %s8
  %s10 = sld [smem:[#allocation0]]
  $region54: #{actor_critic_forward.1} parent=0
    _
  %s12 = ssub.s32 1, %s10
  %s13 = scalar_select 0, %s12, %s10
  $region1: #{actor_critic_forward.1} parent=0
    #allocation2 [shape = 'u8[65536]{0}', space=vmem, size = 0x10000, scoped, tag = 'input window, operand 3, single buffered']
    #allocation3 [shape = 's32[1]{0}', space=sflag, size = 0x4, scoped, tag = 'scoped memory for actor_critic_forward.1']
    #allocation4 [shape = 'u8[65536]{0}', space=vmem, size = 0x10000, scoped, tag = 'input window, operand 5, single buffered']
    #allocation5 [shape = 's32[1]{0}', space=sflag, size = 0x4, scoped, tag = 'scoped memory for actor_critic_forward.1']
    %14 = vsyncpa [#allocation3], 0
    %15 = vsyncpa [#allocation5], 0
    // Predicated region
    $region2: #{actor_critic_forward.1} parent=1 // pred_check
      _
    $region3: #{actor_critic_forward.1} parent=1 // pred_check_branch
      %17 = sbr.rel (0) target = $region5
    $region4: #{actor_critic_forward.1} parent=1 // pred_region
      _
    $region5: #{actor_critic_forward.1} parent=1 // pred_fallthru
      _
    // Predicated region
    $region6: #{actor_critic_forward.1} parent=1 // pred_check
      _
    $region7: #{actor_critic_forward.1} parent=1 // pred_check_branch
      %19 = sbr.rel (0) target = $region9
    $region8: #{actor_critic_forward.1} parent=1 // pred_region
      _
    $region9: #{actor_critic_forward.1} parent=1 // pred_fallthru
      _
    // Predicated region
    $region10: #{actor_critic_forward.1} parent=1 // pred_check
      _
    $region11: #{actor_critic_forward.1} parent=1 // pred_check_branch
      %21 = sbr.rel (0) target = $region13
    $region12: #{actor_critic_forward.1} parent=1 // pred_region
      _
    $region13: #{actor_critic_forward.1} parent=1 // pred_fallthru
      _
    // Predicated region
    $region14: #{actor_critic_forward.1} parent=1 // pred_check
      _
    $region15: #{actor_critic_forward.1} parent=1 // pred_check_branch
      %23 = sbr.rel (0) target = $region17
    $region16: #{actor_critic_forward.1} parent=1 // pred_region
      %s25 = ssub.s32 2048, 2048
      %26 = vsyncadd [#allocation3], %s25
      %s27 = sshll.u32 [#allocation2], 4
      %s28 = int_to_ptr.vmem [resolvable:$true] %s27
      %33 = dma.hbm_to_vmem [thread:$0]  %s3, 2048, %s28, [#allocation3], 128, 128, 8
    $region17: #{actor_critic_forward.1} parent=1 // pred_fallthru
      _
    // Predicated region
    $region18: #{actor_critic_forward.1} parent=1 // pred_check
      _
    $region19: #{actor_critic_forward.1} parent=1 // pred_check_branch
      %35 = sbr.rel (0) target = $region21
    $region20: #{actor_critic_forward.1} parent=1 // pred_region
      _
    $region21: #{actor_critic_forward.1} parent=1 // pred_fallthru
      _
    // Predicated region
    $region22: #{actor_critic_forward.1} parent=1 // pred_check
      _
    $region23: #{actor_critic_forward.1} parent=1 // pred_check_branch
      %37 = sbr.rel (0) target = $region25
    $region24: #{actor_critic_forward.1} parent=1 // pred_region
      %s39 = ssub.s32 2048, 2048
      %40 = vsyncadd [#allocation5], %s39
      %s41 = sshll.u32 [#allocation4], 4
      %s42 = int_to_ptr.vmem [resolvable:$true] %s41
      %47 = dma.hbm_to_vmem [thread:$0]  %s5, 2048, %s42, [#allocation5], 128, 128, 8
    $region25: #{actor_critic_forward.1} parent=1 // pred_fallthru
      _
    // Predicated region
    $region26: #{actor_critic_forward.1} parent=1 // pred_check
      _
    $region27: #{actor_critic_forward.1} parent=1 // pred_check_branch
      %49 = sbr.rel (0) target = $region29
    $region28: #{actor_critic_forward.1} parent=1 // pred_region
      _
    $region29: #{actor_critic_forward.1} parent=1 // pred_fallthru
      _
    // Predicated region
    $region30: #{actor_critic_forward.1} parent=1 // pred_check
      _
    $region31: #{actor_critic_forward.1} parent=1 // pred_check_branch
      %51 = sbr.rel (0) target = $region33
    $region32: #{actor_critic_forward.1} parent=1 // pred_region
      %52 = dma.done [#allocation3], 2048
    $region33: #{actor_critic_forward.1} parent=1 // pred_fallthru
      _
    // Predicated region
    $region34: #{actor_critic_forward.1} parent=1 // pred_check
      _
    $region35: #{actor_critic_forward.1} parent=1 // pred_check_branch
      %54 = sbr.rel (0) target = $region37
    $region36: #{actor_critic_forward.1} parent=1 // pred_region
      %55 = dma.done [#allocation5], 2048
    $region37: #{actor_critic_forward.1} parent=1 // pred_fallthru
      _
    %v56 = vld [vmem:[%s0] sm:$0xff]
    %v57 = vld [vmem:[%s1] sm:$0xff]
    %v58 = vld [vmem:[%s1 + $0x8] sm:$0xff]
    %v59 = vld [vmem:[%s2] sm:$0x1]
    %v61 = vlaneseq
    %v62 = vshrl.u32 %v61, 7
    %v63 = vsub.s32 0, %v62
    %v64 = vrot.slane %v59, %v63
    %vm66 = vcmask 130048
    %v68 = vsel %vm66, %v56, 0
    %70 = vmatprep.subr.mxu0 0.0
    %71 = vmatpush1.msra.mxu0 %v57
    %72 = vmatprep.subr.mxu0 0.0
    %73 = vmatpush1.msra.mxu0 %v58
    %74 = vmatprep.subr.mxu0 0.0
    %75 = vmatpush1.msra.mxu0 0.0
    %76 = vmatprep.subr.mxu0 0.0
    %77 = vmatpush1.msra.mxu0 0.0
    %78 = vmatprep.subr.mxu0 0.0
    %79 = vmatpush1.msra.mxu0 0.0
    %80 = vmatprep.subr.mxu0 0.0
    %81 = vmatpush1.msra.mxu0 0.0
    %82 = vmatprep.subr.mxu0 0.0
    %83 = vmatpush1.msra.mxu0 0.0
    %84 = vmatprep.subr.mxu0 0.0
    %85 = vmatpush1.msra.mxu0 0.0
    %86 = vmatprep.subr.mxu0 0.0
    %87 = vmatpush1.msra.mxu0 0.0
    %88 = vmatprep.subr.mxu0 0.0
    %89 = vmatpush1.msra.mxu0 0.0
    %90 = vmatprep.subr.mxu0 0.0
    %91 = vmatpush1.msra.mxu0 0.0
    %92 = vmatprep.subr.mxu0 0.0
    %93 = vmatpush1.msra.mxu0 0.0
    %94 = vmatprep.subr.mxu0 0.0
    %95 = vmatpush1.msra.mxu0 0.0
    %96 = vmatprep.subr.mxu0 0.0
    %97 = vmatpush1.msra.mxu0 0.0
    %98 = vmatprep.subr.mxu0 0.0
    %99 = vmatpush1.msra.mxu0 0.0
    %100 = vmatprep.subr.mxu0 0.0
    %101 = vmatpush1.msra.mxu0 0.0
    %102 = vmatprep.subr.mxu0 0.0
    %103 = vmatpush1.msra.mxu0 0.0
    %104 = vmatprep.subr.mxu0 0.0
    %105 = vmatpush1.msra.mxu0 0.0
    %106 = vmatprep.subr.mxu0 0.0
    %107 = vmatpush1.msra.mxu0 0.0
    %108 = vmatprep.subr.mxu0 0.0
    %109 = vmatpush1.msra.mxu0 0.0
    %110 = vmatprep.subr.mxu0 0.0
    %111 = vmatpush1.msra.mxu0 0.0
    %112 = vmatprep.subr.mxu0 0.0
    %113 = vmatpush1.msra.mxu0 0.0
    %114 = vmatprep.subr.mxu0 0.0
    %115 = vmatpush1.msra.mxu0 0.0
    %116 = vmatprep.subr.mxu0 0.0
    %117 = vmatpush1.msra.mxu0 0.0
    %118 = vmatprep.subr.mxu0 0.0
    %119 = vmatpush1.msra.mxu0 0.0
    %120 = vmatprep.subr.mxu0 0.0
    %121 = vmatpush1.msra.mxu0 0.0
    %122 = vmatprep.subr.mxu0 0.0
    %123 = vmatpush1.msra.mxu0 0.0
    %124 = vmatprep.subr.mxu0 0.0
    %125 = vmatpush1.msra.mxu0 0.0
    %126 = vmatprep.subr.mxu0 0.0
    %127 = vmatpush1.msra.mxu0 0.0
    %128 = vmatprep.subr.mxu0 0.0
    %129 = vmatpush1.msra.mxu0 0.0
    %130 = vmatprep.subr.mxu0 0.0
    %131 = vmatpush1.msra.mxu0 0.0
    %132 = vmatprep.subr.mxu0 0.0
    %133 = vmatpush1.msra.mxu0 0.0
    %134 = vmatprep.mubr.f32.mxu0 0.0
    %135 = vmatmul.mubr.f32.gmra.mrb[0].mxu0 %v68
    %v136 = vpop.f32.mrb[0].mxu0
    %v137 = vadd.f32 %v64, %v136
    %v138 = vpop.f32.mrb[0].mxu0
    %139 = vdwg.mxu0
    %v140 = vmax.f32 %v137, 0.0
    %v141 = vld [vmem:[#allocation2] sm:$0xff]
    %v142 = vld [vmem:[#allocation2 + $0x8] sm:$0xff]
    %v143 = vld [vmem:[#allocation2 + $0x10] sm:$0xff]
    %v144 = vld [vmem:[#allocation2 + $0x18] sm:$0xff]
    %v145 = vld [vmem:[#allocation2 + $0x20] sm:$0xff]
    %v146 = vld [vmem:[#allocation2 + $0x28] sm:$0xff]
    %v147 = vld [vmem:[#allocation2 + $0x30] sm:$0xff]
    %v148 = vld [vmem:[#allocation2 + $0x38] sm:$0xff]
    %v149 = vld [vmem:[#allocation2 + $0x40] sm:$0xff]
    %v150 = vld [vmem:[#allocation2 + $0x48] sm:$0xff]
    %v151 = vld [vmem:[#allocation2 + $0x50] sm:$0xff]
    %v152 = vld [vmem:[#allocation2 + $0x58] sm:$0xff]
    %v153 = vld [vmem:[#allocation2 + $0x60] sm:$0xff]
    %v154 = vld [vmem:[#allocation2 + $0x68] sm:$0xff]
    %v155 = vld [vmem:[#allocation2 + $0x70] sm:$0xff]
    %v156 = vld [vmem:[#allocation2 + $0x78] sm:$0xff]
    %v157 = vld [vmem:[%s4] sm:$0x1]
    %v159 = vlaneseq
    %v160 = vshrl.u32 %v159, 7
    %v161 = vsub.s32 0, %v160
    %v162 = vrot.slane %v157, %v161
    %164 = vmatprep.subr.mxu0 0.0
    %165 = vmatpush1.msra.mxu0 %v141
    %166 = vmatprep.subr.mxu0 0.0
    %167 = vmatpush1.msra.mxu0 %v142
    %168 = vmatprep.subr.mxu0 0.0
    %169 = vmatpush1.msra.mxu0 %v143
    %170 = vmatprep.subr.mxu0 0.0
    %171 = vmatpush1.msra.mxu0 %v144
    %172 = vmatprep.subr.mxu0 0.0
    %173 = vmatpush1.msra.mxu0 %v145
    %174 = vmatprep.subr.mxu0 0.0
    %175 = vmatpush1.msra.mxu0 %v146
    %176 = vmatprep.subr.mxu0 0.0
    %177 = vmatpush1.msra.mxu0 %v147
    %178 = vmatprep.subr.mxu0 0.0
    %179 = vmatpush1.msra.mxu0 %v148
    %180 = vmatprep.subr.mxu0 0.0
    %181 = vmatpush1.msra.mxu0 %v149
    %182 = vmatprep.subr.mxu0 0.0
    %183 = vmatpush1.msra.mxu0 %v150
    %184 = vmatprep.subr.mxu0 0.0
    %185 = vmatpush1.msra.mxu0 %v151
    %186 = vmatprep.subr.mxu0 0.0
    %187 = vmatpush1.msra.mxu0 %v152
    %188 = vmatprep.subr.mxu0 0.0
    %189 = vmatpush1.msra.mxu0 %v153
    %190 = vmatprep.subr.mxu0 0.0
    %191 = vmatpush1.msra.mxu0 %v154
    %192 = vmatprep.subr.mxu0 0.0
    %193 = vmatpush1.msra.mxu0 %v155
    %194 = vmatprep.subr.mxu0 0.0
    %195 = vmatpush1.msra.mxu0 %v156
    %196 = vmatprep.subr.mxu0 0.0
    %197 = vmatpush1.msra.mxu0 0.0
    %198 = vmatprep.subr.mxu0 0.0
    %199 = vmatpush1.msra.mxu0 0.0
    %200 = vmatprep.subr.mxu0 0.0
    %201 = vmatpush1.msra.mxu0 0.0
    %202 = vmatprep.subr.mxu0 0.0
    %203 = vmatpush1.msra.mxu0 0.0
    %204 = vmatprep.subr.mxu0 0.0
    %205 = vmatpush1.msra.mxu0 0.0
    %206 = vmatprep.subr.mxu0 0.0
    %207 = vmatpush1.msra.mxu0 0.0
    %208 = vmatprep.subr.mxu0 0.0
    %209 = vmatpush1.msra.mxu0 0.0
    %210 = vmatprep.subr.mxu0 0.0
    %211 = vmatpush1.msra.mxu0 0.0
    %212 = vmatprep.subr.mxu0 0.0
    %213 = vmatpush1.msra.mxu0 0.0
    %214 = vmatprep.subr.mxu0 0.0
    %215 = vmatpush1.msra.mxu0 0.0
    %216 = vmatprep.subr.mxu0 0.0
    %217 = vmatpush1.msra.mxu0 0.0
    %218 = vmatprep.subr.mxu0 0.0
    %219 = vmatpush1.msra.mxu0 0.0
    %220 = vmatprep.subr.mxu0 0.0
    %221 = vmatpush1.msra.mxu0 0.0
    %222 = vmatprep.subr.mxu0 0.0
    %223 = vmatpush1.msra.mxu0 0.0
    %224 = vmatprep.subr.mxu0 0.0
    %225 = vmatpush1.msra.mxu0 0.0
    %226 = vmatprep.subr.mxu0 0.0
    %227 = vmatpush1.msra.mxu0 0.0
    %228 = vmatprep.mubr.f32.mxu0 0.0
    %229 = vmatmul.mubr.f32.gmra.mrb[0].mxu0 %v140
    %v230 = vpop.f32.mrb[0].mxu0
    %v231 = vadd.f32 %v162, %v230
    %v232 = vpop.f32.mrb[0].mxu0
    %233 = vdwg.mxu0
    %v234 = vmax.f32 %v231, 0.0
    %v235 = vld [vmem:[#allocation4] sm:$0xff]
    %v236 = vld [vmem:[#allocation4 + $0x8] sm:$0xff]
    %v237 = vld [vmem:[#allocation4 + $0x10] sm:$0xff]
    %v238 = vld [vmem:[#allocation4 + $0x18] sm:$0xff]
    %v239 = vld [vmem:[#allocation4 + $0x20] sm:$0xff]
    %v240 = vld [vmem:[#allocation4 + $0x28] sm:$0xff]
    %v241 = vld [vmem:[#allocation4 + $0x30] sm:$0xff]
    %v242 = vld [vmem:[#allocation4 + $0x38] sm:$0xff]
    %v243 = vld [vmem:[#allocation4 + $0x40] sm:$0xff]
    %v244 = vld [vmem:[#allocation4 + $0x48] sm:$0xff]
    %v245 = vld [vmem:[#allocation4 + $0x50] sm:$0xff]
    %v246 = vld [vmem:[#allocation4 + $0x58] sm:$0xff]
    %v247 = vld [vmem:[#allocation4 + $0x60] sm:$0xff]
    %v248 = vld [vmem:[#allocation4 + $0x68] sm:$0xff]
    %v249 = vld [vmem:[#allocation4 + $0x70] sm:$0xff]
    %v250 = vld [vmem:[#allocation4 + $0x78] sm:$0xff]
    %v251 = vld [vmem:[%s6] sm:$0x1]
    %v253 = vlaneseq
    %v254 = vshrl.u32 %v253, 7
    %v255 = vsub.s32 0, %v254
    %v256 = vrot.slane %v251, %v255
    %258 = vmatprep.subr.mxu0 0.0
    %259 = vmatpush1.msra.mxu0 %v235
    %260 = vmatprep.subr.mxu0 0.0
    %261 = vmatpush1.msra.mxu0 %v236
    %262 = vmatprep.subr.mxu0 0.0
    %263 = vmatpush1.msra.mxu0 %v237
    %264 = vmatprep.subr.mxu0 0.0
    %265 = vmatpush1.msra.mxu0 %v238
    %266 = vmatprep.subr.mxu0 0.0
    %267 = vmatpush1.msra.mxu0 %v239
    %268 = vmatprep.subr.mxu0 0.0
    %269 = vmatpush1.msra.mxu0 %v240
    %270 = vmatprep.subr.mxu0 0.0
    %271 = vmatpush1.msra.mxu0 %v241
    %272 = vmatprep.subr.mxu0 0.0
    %273 = vmatpush1.msra.mxu0 %v242
    %274 = vmatprep.subr.mxu0 0.0
    %275 = vmatpush1.msra.mxu0 %v243
    %276 = vmatprep.subr.mxu0 0.0
    %277 = vmatpush1.msra.mxu0 %v244
    %278 = vmatprep.subr.mxu0 0.0
    %279 = vmatpush1.msra.mxu0 %v245
    %280 = vmatprep.subr.mxu0 0.0
    %281 = vmatpush1.msra.mxu0 %v246
    %282 = vmatprep.subr.mxu0 0.0
    %283 = vmatpush1.msra.mxu0 %v247
    %284 = vmatprep.subr.mxu0 0.0
    %285 = vmatpush1.msra.mxu0 %v248
    %286 = vmatprep.subr.mxu0 0.0
    %287 = vmatpush1.msra.mxu0 %v249
    %288 = vmatprep.subr.mxu0 0.0
    %289 = vmatpush1.msra.mxu0 %v250
    %290 = vmatprep.subr.mxu0 0.0
    %291 = vmatpush1.msra.mxu0 0.0
    %292 = vmatprep.subr.mxu0 0.0
    %293 = vmatpush1.msra.mxu0 0.0
    %294 = vmatprep.subr.mxu0 0.0
    %295 = vmatpush1.msra.mxu0 0.0
    %296 = vmatprep.subr.mxu0 0.0
    %297 = vmatpush1.msra.mxu0 0.0
    %298 = vmatprep.subr.mxu0 0.0
    %299 = vmatpush1.msra.mxu0 0.0
    %300 = vmatprep.subr.mxu0 0.0
    %301 = vmatpush1.msra.mxu0 0.0
    %302 = vmatprep.subr.mxu0 0.0
    %303 = vmatpush1.msra.mxu0 0.0
    %304 = vmatprep.subr.mxu0 0.0
    %305 = vmatpush1.msra.mxu0 0.0
    %306 = vmatprep.subr.mxu0 0.0
    %307 = vmatpush1.msra.mxu0 0.0
    %308 = vmatprep.subr.mxu0 0.0
    %309 = vmatpush1.msra.mxu0 0.0
    %310 = vmatprep.subr.mxu0 0.0
    %311 = vmatpush1.msra.mxu0 0.0
    %312 = vmatprep.subr.mxu0 0.0
    %313 = vmatpush1.msra.mxu0 0.0
    %314 = vmatprep.subr.mxu0 0.0
    %315 = vmatpush1.msra.mxu0 0.0
    %316 = vmatprep.subr.mxu0 0.0
    %317 = vmatpush1.msra.mxu0 0.0
    %318 = vmatprep.subr.mxu0 0.0
    %319 = vmatpush1.msra.mxu0 0.0
    %320 = vmatprep.subr.mxu0 0.0
    %321 = vmatpush1.msra.mxu0 0.0
    %322 = vmatprep.mubr.f32.mxu0 0.0
    %323 = vmatmul.mubr.f32.gmra.mrb[0].mxu0 %v234
    %v324 = vpop.f32.mrb[0].mxu0
    %v325 = vadd.f32 %v256, %v324
    %v326 = vpop.f32.mrb[0].mxu0
    %327 = vdwg.mxu0
    %vm328 = vcmask 31744
    %329 = vst.msk [vmem:[%s7] sm:$0xff] %vm328, %v325
    %331 = vrot.lane.b32.xlu0 %v325, 124
    %v332 = vpop.permute.xlu0 %331
    %vm334 = vcmask 7168
    %335 = vst.msk [vmem:[%s8] sm:$0xff] %vm334, %v332
    // Predicated region
    $region38: #{actor_critic_forward.1} parent=1 // pred_check
      _
    $region39: #{actor_critic_forward.1} parent=1 // pred_check_branch
      %337 = sbr.rel (0) target = $region41
    $region40: #{actor_critic_forward.1} parent=1 // pred_region
      _
    $region41: #{actor_critic_forward.1} parent=1 // pred_fallthru
      _
    // Predicated region
    $region42: #{actor_critic_forward.1} parent=1 // pred_check
      _
    $region43: #{actor_critic_forward.1} parent=1 // pred_check_branch
      %339 = sbr.rel (0) target = $region45
    $region44: #{actor_critic_forward.1} parent=1 // pred_region
      _
    $region45: #{actor_critic_forward.1} parent=1 // pred_fallthru
      _
    // Predicated region
    $region46: #{actor_critic_forward.1} parent=1 // pred_check
      _
    $region47: #{actor_critic_forward.1} parent=1 // pred_check_branch
      %341 = sbr.rel (0) target = $region49
    $region48: #{actor_critic_forward.1} parent=1 // pred_region
      _
    $region49: #{actor_critic_forward.1} parent=1 // pred_fallthru
      _
    // Predicated region
    $region50: #{actor_critic_forward.1} parent=1 // pred_check
      _
    $region51: #{actor_critic_forward.1} parent=1 // pred_check_branch
      %343 = sbr.rel (0) target = $region53
    $region52: #{actor_critic_forward.1} parent=1 // pred_region
      _
    $region53: #{actor_critic_forward.1} parent=1 // pred_fallthru
      _
    %344 = vsyncpa [#allocation3], 1
    %345 = vsyncpa [#allocation5], 1

</llo_original>
